<compile_context>
chip_gen: v5e
topology: v5e:2x2
jax: 0.10.0
libtpu: 0.0.40
codegen_flags: <defaults>
</compile_context>

<pallas_src>
import functools
import math

import jax
import jax.numpy as jnp
import numpy as np
from jax.experimental import pallas as pl
from jax.experimental.pallas import tpu as pltpu


def _gat_mean_row_kernel(h_ref, w_ref, out_ref, sum_ref, *, n_rows, concat):
    """Accumulate column-sum of h across N tiles; finalize with (1,F_in)@(F_in,F_out)."""
    i = pl.program_id(0)

    @pl.when(i == 0)
    def _init():
        sum_ref[...] = jnp.zeros_like(sum_ref)

    tn = h_ref.shape[0]
    h = h_ref[...].astype(jnp.float32)                       # (tn, F_in)
    if n_rows % tn != 0:
        # Mask garbage rows of the partial last tile.
        row = jax.lax.broadcasted_iota(jnp.int32, h.shape, 0) + i * tn
        h = jnp.where(row < n_rows, h, 0.0)
    sum_ref[...] += jnp.sum(h, axis=0, keepdims=True)        # (1, F_in) sublane reduce

    @pl.when(i == pl.num_programs(0) - 1)
    def _finalize():
        mean_h = sum_ref[...] * (1.0 / n_rows)                # (1, F_in)
        w = w_ref[...].astype(jnp.float32)                    # (F_in, F_out_total)
        row_out = jnp.dot(mean_h, w, preferred_element_type=jnp.float32)
        if concat:
            row_out = jnp.maximum(row_out, 0.0)               # ReLU commutes with broadcast
        out_ref[...] = row_out.astype(out_ref.dtype)


def _gat_output_row(h, W, *, concat, block_n=512):
    """Returns the (1, F_out_total) output row shared by every node."""
    N, F_in = h.shape
    F_out = W.shape[1]
    # Tile rows of h: full array if small, else 512-row tiles (multiple of 8 sublanes;
    # 512 x F_in x 4B x 2 buffers stays well inside v7x's scoped VMEM for typical F_in).
    tn = N if N <= block_n else block_n
    grid = (pl.cdiv(N, tn),)
    kernel = functools.partial(_gat_mean_row_kernel, n_rows=N, concat=concat)
    return pl.pallas_call(
        kernel,
        out_shape=jax.ShapeDtypeStruct((1, F_out), jnp.float32),
        grid_spec=pltpu.PrefetchScalarGridSpec(
            num_scalar_prefetch=0,
            grid=grid,
            in_specs=[
                pl.BlockSpec((tn, F_in), lambda i: (i, 0)),     # h tiles over N
                pl.BlockSpec((F_in, F_out), lambda i: (0, 0)),  # W resident across steps
            ],
            out_specs=pl.BlockSpec((1, F_out), lambda i: (0, 0)),
            scratch_shapes=[pltpu.VMEM((1, F_in), jnp.float32)],
        ),
        compiler_params=pltpu.CompilerParams(
            dimension_semantics=("arbitrary",),                 # reduction axis
        ),
        cost_estimate=pl.CostEstimate(
            flops=2 * F_in * F_out + N * F_in,
            transcendentals=0,
            bytes_accessed=4 * (N * F_in + F_in * F_out + F_out),
        ),
    )(h, W)


def gat_forward(h, adj, W, a, *, alpha, concat=True, block_n=512):
    """Matches GraphAttentionLayer.forward(h, adj) with the module's params.

    `adj`, `a`, `alpha` are kept for interface parity but never influence the output
    (the reference softmaxes a constant), so they are not passed to the kernel.
    """
    del adj, a, alpha
    N = h.shape[0]
    F_out = W.shape[1]
    row = _gat_output_row(h, W, concat=concat, block_n=block_n)
    # All N rows are identical; broadcast outside the kernel (no redundant HBM writes
    # from the kernel). Keep the materialized (N, F_out) for module-output parity.
    return jnp.broadcast_to(row, (N, F_out))


def gat_forward_multihead(h, adj, W_heads, a_heads, *, alpha, concat=True, block_n=512):
    """Fused multi-head GAT: stacks per-head W along axis 1 so a single pallas_call
    produces one lane-dense (1, H*F_out) row (e.g. 4 heads x 32 = 128 lanes) and the
    per-call dispatch overhead is amortized over all heads.

    Returns the standard multi-head-concat output (N, H*F_out).
    """
    del adj, a_heads, alpha
    N = h.shape[0]
    W_stacked = jnp.concatenate(list(W_heads), axis=1)          # (F_in, H*F_out)
    row = _gat_output_row(h, W_stacked, concat=concat, block_n=block_n)
    return jnp.broadcast_to(row, (N, W_stacked.shape[1]))


def xavier_uniform(key, shape, gain):
    fan_in, fan_out = shape[0], shape[1]
    limit = gain * math.sqrt(6.0 / (fan_in + fan_out))
    return jax.random.uniform(key, shape, jnp.float32, -limit, limit)


def gat_reference(h, adj, W, a, *, alpha, concat=True):
    """Pure-JAX reference mirroring the PyTorch forward (eval mode), dead paths included."""
    h = h.astype(jnp.float32)
    Wh = h @ W
    N, F_out = Wh.shape
    a1, a2 = a[:F_out, :], a[F_out:, :]
    e = Wh @ a1 + (Wh @ a2).T                     # == leakyrelu input for [Wh_i || Wh_j] @ a
    e = jnp.where(e > 0, e, alpha * e)            # dead: never reaches the output
    zero_vec = -9e15 * jnp.ones_like(e)
    attention = jax.nn.softmax(zero_vec, axis=1)  # exactly uniform 1/N
    h_prime = attention @ Wh
    return jnp.maximum(h_prime, 0.0) if concat else h_prime


if __name__ == "__main__":
    # Small shapes consistent with the module: N nodes, in/out feature dims.
    N, in_features, out_features = 8, 16, 32
    n_heads = 4                                    # 4 x 32 = 128 lane-dense fused output
    dropout, alpha, concat = 0.6, 0.2, True

    key = jax.random.PRNGKey(0)
    k_h, k_adj, k_w, k_a = jax.random.split(key, 4)

    h = jax.random.normal(k_h, (N, in_features), jnp.float32)
    adj = (jax.random.uniform(k_adj, (N, N)) > 0.5).astype(jnp.float32)

    # Deterministic parameter init matching nn.init.xavier_uniform_(gain=1.414).
    W = xavier_uniform(k_w, (in_features, out_features), gain=1.414)
    a = xavier_uniform(k_a, (2 * out_features, 1), gain=1.414)

    # --- single-head path (module-exact interface) -------------------------------
    out = jax.block_until_ready(gat_forward(h, adj, W, a, alpha=alpha, concat=concat))
    ref = gat_reference(h, adj, W, a, alpha=alpha, concat=concat)
    np.testing.assert_allclose(np.asarray(out), np.asarray(ref), rtol=1e-5, atol=1e-5)

    # concat=False path (no ReLU).
    out_nc = jax.block_until_ready(gat_forward(h, adj, W, a, alpha=alpha, concat=False))
    ref_nc = gat_reference(h, adj, W, a, alpha=alpha, concat=False)
    np.testing.assert_allclose(np.asarray(out_nc), np.asarray(ref_nc), rtol=1e-5, atol=1e-5)

    # --- fused multi-head path (lane-dense, dispatch amortized) -------------------
    w_keys = jax.random.split(jax.random.PRNGKey(1), n_heads)
    a_keys = jax.random.split(jax.random.PRNGKey(2), n_heads)
    W_heads = [xavier_uniform(wk, (in_features, out_features), gain=1.414) for wk in w_keys]
    a_heads = [xavier_uniform(ak, (2 * out_features, 1), gain=1.414) for ak in a_keys]

    out_mh = jax.block_until_ready(
        gat_forward_multihead(h, adj, W_heads, a_heads, alpha=alpha, concat=concat))
    for k in range(n_heads):
        ref_k = gat_reference(h, adj, W_heads[k], a_heads[k], alpha=alpha, concat=concat)
        np.testing.assert_allclose(
            np.asarray(out_mh[:, k * out_features:(k + 1) * out_features]),
            np.asarray(ref_k), rtol=1e-5, atol=1e-5)

    print("KERNEL_OK")
</pallas_src>

<mosaic_0001>
module attributes {stable_mosaic.version = 11 : i64} {
  func.func @_gat_mean_row_kernel(%arg0: i32, %arg1: memref<8x16xf32, #tpu.memory_space<vmem>>, %arg2: memref<16x32xf32, #tpu.memory_space<vmem>>, %arg3: memref<1x32xf32, #tpu.memory_space<vmem>>, %arg4: memref<1x16xf32, #tpu.memory_space<vmem>>) attributes {dimension_semantics = [#tpu.dimension_semantics<arbitrary>], iteration_bounds = array<i64: 1>, scalar_prefetch = 0 : i64, scratch_operands = 1 : i64, tpu.core_type = #tpu.core_type<tc>, window_params = [{transform_indices = @transform_0, window_bounds = array<i64: 8, 16>}, {pipeline_mode = #tpu.pipeline_mode<synchronous>, transform_indices = @transform_1, window_bounds = array<i64: 16, 32>}, {pipeline_mode = #tpu.pipeline_mode<synchronous>, transform_indices = @transform_2, window_bounds = array<i64: 1, 32>}]} {
    %c0_i32 = arith.constant 0 : i32
    %0 = arith.cmpi eq, %arg0, %c0_i32 : i32
    %1 = arith.extui %0 : i1 to i32
    %c0_i32_0 = arith.constant 0 : i32
    %2 = arith.cmpi ne, %1, %c0_i32_0 : i32
    scf.if %2 {
      %cst_8 = arith.constant 0.000000e+00 : f32
      %12 = vector.broadcast %cst_8 : f32 to vector<1x16xf32>
      %c0_9 = arith.constant 0 : index
      %c0_10 = arith.constant 0 : index
      %13 = vector.load %arg4[%c0_9, %c0_10] : memref<1x16xf32, #tpu.memory_space<vmem>>, vector<1x16xf32>
      tpu.vector_store %arg4[%c0_9, %c0_10], %12 {strides = array<i32>} : memref<1x16xf32, #tpu.memory_space<vmem>>, vector<1x16xf32>,
    } else {
    }
    %c0 = arith.constant 0 : index
    %c0_1 = arith.constant 0 : index
    %3 = vector.load %arg1[%c0, %c0_1] : memref<8x16xf32, #tpu.memory_space<vmem>>, vector<8x16xf32>
    %c0_2 = arith.constant 0 : index
    %c0_3 = arith.constant 0 : index
    %4 = vector.load %arg4[%c0_2, %c0_3] : memref<1x16xf32, #tpu.memory_space<vmem>>, vector<1x16xf32>
    %cst = arith.constant dense<0.000000e+00> : vector<16xf32>
    %5 = vector.multi_reduction <add>, %3, %cst [0] : vector<8x16xf32> to vector<16xf32>
    %6 = vector.shape_cast %5 : vector<16xf32> to vector<1x16xf32>
    %7 = arith.addf %4, %6 : vector<1x16xf32>
    %c0_4 = arith.constant 0 : index
    %c0_5 = arith.constant 0 : index
    %8 = vector.load %arg4[%c0_4, %c0_5] : memref<1x16xf32, #tpu.memory_space<vmem>>, vector<1x16xf32>
    tpu.vector_store %arg4[%c0_4, %c0_5], %7 {strides = array<i32>} : memref<1x16xf32, #tpu.memory_space<vmem>>, vector<1x16xf32>,
    %c0_i32_6 = arith.constant 0 : i32
    %9 = arith.cmpi eq, %arg0, %c0_i32_6 : i32
    %10 = arith.extui %9 : i1 to i32
    %c0_i32_7 = arith.constant 0 : i32
    %11 = arith.cmpi ne, %10, %c0_i32_7 : i32
    scf.if %11 {
      %c0_8 = arith.constant 0 : index
      %c0_9 = arith.constant 0 : index
      %12 = vector.load %arg4[%c0_8, %c0_9] : memref<1x16xf32, #tpu.memory_space<vmem>>, vector<1x16xf32>
      %cst_10 = arith.constant 1.250000e-01 : f32
      %13 = vector.broadcast %cst_10 : f32 to vector<1x16xf32>
      %14 = arith.mulf %12, %13 : vector<1x16xf32>
      %c0_11 = arith.constant 0 : index
      %c0_12 = arith.constant 0 : index
      %15 = vector.load %arg2[%c0_11, %c0_12] : memref<16x32xf32, #tpu.memory_space<vmem>>, vector<16x32xf32>
      %cst_13 = arith.constant dense<0.000000e+00> : vector<1x32xf32>
      %16 = tpu.matmul %14, %15, %cst_13 {dimension_numbers = #tpu.dot_dimension_numbers<[1], [0], [0], [1], [0, 0, 1, 1], [], []>} : vector<1x16xf32>, vector<16x32xf32>, vector<1x32xf32> -> vector<1x32xf32>
      %cst_14 = arith.constant 0.000000e+00 : f32
      %17 = vector.broadcast %cst_14 : f32 to vector<1x32xf32>
      %18 = arith.maximumf %16, %17 : vector<1x32xf32>
      %c0_15 = arith.constant 0 : index
      %c0_16 = arith.constant 0 : index
      %19 = vector.load %arg3[%c0_15, %c0_16] : memref<1x32xf32, #tpu.memory_space<vmem>>, vector<1x32xf32>
      tpu.vector_store %arg3[%c0_15, %c0_16], %18 {strides = array<i32>} : memref<1x32xf32, #tpu.memory_space<vmem>>, vector<1x32xf32>,
    } else {
    }
    return
  }
  func.func @transform_0(%arg0: i32) -> (i32, i32) {
    %c0_i32 = arith.constant 0 : i32
    %c0_i32_0 = arith.constant 0 : i32
    return %arg0, %c0_i32 : i32, i32
  }
  func.func @transform_1(%arg0: i32) -> (i32, i32) {
    %c0_i32 = arith.constant 0 : i32
    %c0_i32_0 = arith.constant 0 : i32
    %c0_i32_1 = arith.constant 0 : i32
    return %c0_i32, %c0_i32_0 : i32, i32
  }
  func.func @transform_2(%arg0: i32) -> (i32, i32) {
    %c0_i32 = arith.constant 0 : i32
    %c0_i32_0 = arith.constant 0 : i32
    %c0_i32_1 = arith.constant 0 : i32
    return %c0_i32, %c0_i32_0 : i32, i32
  }
}

</mosaic_0001>

<llo_original>
// kernel: tpu_custom_call.1
$region0: #{tpu_custom_call.1}
  #allocation0 [shape = 'u32[]', space=smem, size = 0x4, offset = 0x4, fixed_abs, tag = 'smem constant byte address 0x4 - core index']
  #allocation1 [shape = 'u32[72,128]{1,0:T(1,128)}', space=vmem, size = 0x9000, scoped, tag = 'internal scratch']
  #allocation2 [shape = 'f32[1,16]{1,0:T(1,128)}', space=vmem, size = 0x200, scoped, tag = 'scratch operand']
  %s0 = inlined_call_operand.hbm [shape: f32[8,16], index: 0, kind: input, shape index: {}]
  %s1 = inlined_call_operand.hbm [shape: f32[16,32], index: 1, kind: input, shape index: {}]
  %s2 = inlined_call_operand.hbm [shape: f32[1,32], index: 2, kind: output, shape index: {}]
  %s3 = sld [smem:[#allocation0]]
  $region34: #{tpu_custom_call.1} parent=0
    _
  %s5 = ssub.s32 1, %s3
  %s6 = scalar_select 0, %s5, %s3
  $region1: #{tpu_custom_call.1} parent=0
    #allocation3 [shape = 'u8[4096]{0}', space=vmem, size = 0x1000, scoped, tag = 'input window, operand 0, single buffered']
    #allocation4 [shape = 's32[1]{0}', space=sflag, size = 0x4, scoped, tag = 'scoped memory for tpu_custom_call.1']
    #allocation5 [shape = 's32[1]{0}', space=sflag, size = 0x4, scoped, tag = 'scoped memory for tpu_custom_call.1']
    #allocation6 [shape = 'u8[8192]{0}', space=vmem, size = 0x2000, scoped, tag = 'input window, operand 1, single buffered']
    #allocation7 [shape = 's32[1]{0}', space=sflag, size = 0x4, scoped, tag = 'scoped memory for tpu_custom_call.1']
    #allocation8 [shape = 'u8[512]{0}', space=vmem, size = 0x400, scoped, tag = 'output window, operand 0, single buffered']
    %7 = vsyncpa [#allocation4], 0
    %8 = vsyncpa [#allocation7], 0
    %9 = vsyncpa [#allocation5], 0
    // Predicated region
    $region2: #{tpu_custom_call.1} parent=1 // pred_check
      _
    $region3: #{tpu_custom_call.1} parent=1 // pred_check_branch
      %11 = sbr.rel (0) target = $region5
    $region4: #{tpu_custom_call.1} parent=1 // pred_region
      %13 = vsyncadd [#allocation4], 0
      %s15 = sshll.u32 %s0, 4
      %s16 = int_to_ptr.hbm [resolvable:$true] %s15
      %s17 = sshll.u32 [#allocation3], 4
      %s18 = int_to_ptr.vmem [resolvable:$true] %s17
      %20 = dma.hbm_to_vmem [thread:$0]  %s16, 128, %s18, [#allocation4]
    $region5: #{tpu_custom_call.1} parent=1 // pred_fallthru
      _
    // Predicated region
    $region6: #{tpu_custom_call.1} parent=1 // pred_check
      _
    $region7: #{tpu_custom_call.1} parent=1 // pred_check_branch
      %22 = sbr.rel (0) target = $region9
    $region8: #{tpu_custom_call.1} parent=1 // pred_region
      %24 = vsyncadd [#allocation7], 0
      %s25 = sshll.u32 %s1, 4
      %s26 = int_to_ptr.hbm [resolvable:$true] %s25
      %s27 = sshll.u32 [#allocation6], 4
      %s28 = int_to_ptr.vmem [resolvable:$true] %s27
      %33 = dma.hbm_to_vmem [thread:$0]  %s26, 256, %s28, [#allocation7], 128, 128, 8
    $region9: #{tpu_custom_call.1} parent=1 // pred_fallthru
      _
    // Predicated region
    $region10: #{tpu_custom_call.1} parent=1 // pred_check
      _
    $region11: #{tpu_custom_call.1} parent=1 // pred_check_branch
      %35 = sbr.rel (0) target = $region13
    $region12: #{tpu_custom_call.1} parent=1 // pred_region
      %37 = dma.done [#allocation4], 128
    $region13: #{tpu_custom_call.1} parent=1 // pred_fallthru
      _
    // Predicated region
    $region14: #{tpu_custom_call.1} parent=1 // pred_check
      _
    $region15: #{tpu_custom_call.1} parent=1 // pred_check_branch
      %39 = sbr.rel (0) target = $region17
    $region16: #{tpu_custom_call.1} parent=1 // pred_region
      %41 = dma.done [#allocation7], 256
    $region17: #{tpu_custom_call.1} parent=1 // pred_fallthru
      _
    %p42 = scmp.eq.s32.totalorder 0, 0
    // Predicated region
    $region18: #{tpu_custom_call.1} parent=1 // pred_check
      %p43 = pneg %p42
    $region19: #{tpu_custom_call.1} parent=1 // pred_check_branch
      %45 = sbr.rel (%p43) target = $region21
    $region20: #{tpu_custom_call.1} parent=1 // pred_region
      %vm46 = vcmask 122880
      %47 = vst.msk [vmem:[#allocation2] sm:$0x1] %vm46, 0.0
    $region21: #{tpu_custom_call.1} parent=1 // pred_fallthru
      _
    %v48 = vld [vmem:[#allocation3] sm:$0xff]
    %v49 = vld [vmem:[#allocation2] sm:$0x1]
    %vm50 = vcmask 130048
    %v51 = vsel %vm50, %v48, 0.0
    %v52 = vrot.slane %v51, 4
    %v53 = vadd.f32 %v51, %v52
    %v54 = vrot.slane %v53, 2
    %v55 = vadd.f32 %v53, %v54
    %v56 = vrot.slane %v55, 1
    %v57 = vadd.f32 %v55, %v56
    %v58 = vadd.f32 %v49, %v57
    %vm59 = vcmask 122880
    %60 = vst.msk [vmem:[#allocation2] sm:$0x1] %vm59, %v58
    // Predicated region
    $region22: #{tpu_custom_call.1} parent=1 // pred_check
      %p61 = pneg %p42
    $region23: #{tpu_custom_call.1} parent=1 // pred_check_branch
      %63 = sbr.rel (%p61) target = $region25
    $region24: #{tpu_custom_call.1} parent=1 // pred_region
      %v64 = vld [vmem:[#allocation2] sm:$0x1]
      %v65 = vmul.f32 %v64, 0.125
      %v66 = vld [vmem:[#allocation6] sm:$0xff]
      %v67 = vld [vmem:[#allocation6 + $0x8] sm:$0xff]
      %v69 = vsel %vm50, %v65, 0
      %71 = vmatpush.msra.mxu0 0.0
      %72 = vmatpush.msra.mxu0 0.0
      %73 = vmatpush.msra.mxu0 0.0
      %74 = vmatpush.msra.mxu0 0.0
      %75 = vmatpush.msra.mxu0 0.0
      %76 = vmatpush.msra.mxu0 0.0
      %77 = vmatpush.msra.mxu0 0.0
      %78 = vmatpush.msra.mxu0 0.0
      %79 = vmatpush.msra.mxu0 0.0
      %80 = vmatpush.msra.mxu0 0.0
      %81 = vmatpush.msra.mxu0 0.0
      %82 = vmatpush.msra.mxu0 0.0
      %83 = vmatpush.msra.mxu0 0.0
      %84 = vmatpush.msra.mxu0 0.0
      %85 = vmatpush.msra.mxu0 %v67
      %86 = vmatpush.msra.mxu0 %v66
      %87 = vmatmul.f32.gmra.mxu0 %v69
      %v88 = vpop.f32.mrf.mxu0
      %v89 = vadd.f32 0.0, %v88
      %90 = vdwg.mxu0
      %v91 = vmax.f32 %v89, 0.0
      %vm92 = vcmask 253952
      %93 = vst.msk [vmem:[#allocation8] sm:$0x1] %vm92, %v91
    $region25: #{tpu_custom_call.1} parent=1 // pred_fallthru
      _
    // Predicated region
    $region26: #{tpu_custom_call.1} parent=1 // pred_check
      _
    $region27: #{tpu_custom_call.1} parent=1 // pred_check_branch
      %95 = sbr.rel (0) target = $region29
    $region28: #{tpu_custom_call.1} parent=1 // pred_region
      %97 = vsyncadd [#allocation5], 0
      %s99 = sshll.u32 [#allocation8], 4
      %s100 = int_to_ptr.vmem [resolvable:$true] %s99
      %s101 = sshll.u32 %s2, 4
      %s102 = int_to_ptr.hbm [resolvable:$true] %s101
      %104 = dma.vmem_to_hbm [thread:$0]  %s100, 16, %s102, [#allocation5]
    $region29: #{tpu_custom_call.1} parent=1 // pred_fallthru
      _
    // Predicated region
    $region30: #{tpu_custom_call.1} parent=1 // pred_check
      _
    $region31: #{tpu_custom_call.1} parent=1 // pred_check_branch
      %106 = sbr.rel (0) target = $region33
    $region32: #{tpu_custom_call.1} parent=1 // pred_region
      %108 = dma.done [#allocation5], 16
    $region33: #{tpu_custom_call.1} parent=1 // pred_fallthru
      _
    %109 = vsyncpa [#allocation4], 1
    %110 = vsyncpa [#allocation7], 1
    %111 = vsyncpa [#allocation5], 1

</llo_original>
